<compile_context>
chip_gen: v5e
topology: v5e:2x2
jax: 0.10.0
libtpu: 0.0.40
codegen_flags: <defaults>
</compile_context>

<pallas_src>
import functools

import numpy as np
import jax
import jax.numpy as jnp
from jax.experimental import pallas as pl
from jax.experimental.pallas import tpu as pltpu


def _make_reducer_kernel(bn_relu: bool):
    if bn_relu:
        def kernel(x_ref, w_ref, shift_ref, o_ref):
            # x_ref:     (Cin, TS)   f32  -- cast to bf16 in-register for the MXU
            # w_ref:     (Cout, Cin) bf16 -- 1x1 conv weights with BN scale folded in
            # shift_ref: (Cout, 1)   f32  -- folded BN shift
            # o_ref:     (Cout, TS)  out_dtype
            x = x_ref[...].astype(jnp.bfloat16)
            acc = jnp.dot(w_ref[...], x, preferred_element_type=jnp.float32)
            y = jnp.maximum(acc + shift_ref[...], 0.0)
            o_ref[...] = y.astype(o_ref.dtype)
    else:
        def kernel(x_ref, w_ref, o_ref):
            x = x_ref[...].astype(jnp.bfloat16)
            acc = jnp.dot(w_ref[...], x, preferred_element_type=jnp.float32)
            o_ref[...] = acc.astype(o_ref.dtype)
    return kernel


def _vmem_budget_bytes() -> int:
    """Budget for the double-buffered x/out blocks. Generation-aware when the
    hardware query is available; otherwise conservative enough for v7x."""
    default = 24 << 20
    try:
        cap = int(pltpu.get_tpu_info().vmem_capacity_bytes)
        # Use at most ~1/3 of physical VMEM for our pipelined blocks.
        return int(min(default, max(8 << 20, cap // 3)))
    except Exception:
        return default


def _pick_spatial_tile(hw_pad: int, n: int, cin: int, cout: int,
                       x_bytes: int, out_bytes: int, budget_bytes: int) -> int:
    """Largest multiple-of-128 divisor of hw_pad whose double-buffered
    x + out blocks fit the VMEM budget. hw_pad must be a multiple of 128.
    If N == 1, keep >= 2 spatial blocks when possible (v7x megacore)."""
    m = hw_pad // 128
    per_lane = 2 * cin * x_bytes + 2 * cout * out_bytes   # double-buffered bytes / lane col
    max_ts = max(128, budget_bytes // max(per_lane, 1))

    best = 128
    for d in range(1, m + 1):
        if m % d == 0 and 128 * d <= max_ts:
            best = 128 * d

    # Ensure >= 2 grid steps along a parallel axis when the batch is 1.
    if n == 1 and best == hw_pad and m >= 2:
        best = 128 * max(d for d in range(1, m) if m % d == 0)
    return best


@functools.partial(jax.jit, static_argnames=("bn_relu", "out_dtype"))
def reducer_forward(x_nchw, w_oihw, bn_gamma, bn_beta, bn_mean, bn_var,
                    eps=1e-5, bn_relu=True, out_dtype=jnp.float32):
    """Forward of Reducer. x_nchw: (N, Cin, H, W) f32 -> (N, Cout, H, W) out_dtype."""
    N, Cin, H, W = x_nchw.shape
    Cout = w_oihw.shape[0]
    HW = H * W
    HW_pad = ((HW + 127) // 128) * 128

    # NCHW -> (N, Cin, H*W): pure reshape, spatial on lanes. Keep f32; the
    # bf16 cast happens in-kernel (no extra HBM pass over activations).
    x = x_nchw.reshape(N, Cin, HW)
    if HW_pad != HW:
        x = jnp.pad(x, ((0, 0), (0, 0), (0, HW_pad - HW)))

    # 1x1 conv weight (Cout, Cin, 1, 1) -> (Cout, Cin); fold BN scale into it.
    w = w_oihw.reshape(Cout, Cin).astype(jnp.float32)
    if bn_relu:
        scale = bn_gamma.astype(jnp.float32) / jnp.sqrt(bn_var.astype(jnp.float32) + eps)
        shift = (bn_beta.astype(jnp.float32)
                 - bn_mean.astype(jnp.float32) * scale).reshape(Cout, 1)
        w = w * scale[:, None]
    w_bf16 = w.astype(jnp.bfloat16)

    out_bytes = np.dtype(out_dtype).itemsize
    budget = _vmem_budget_bytes()
    TS = _pick_spatial_tile(HW_pad, N, Cin, Cout, 4, out_bytes, budget)
    n_sblocks = HW_pad // TS

    in_specs = [
        pl.BlockSpec((None, Cin, TS), lambda n, s: (n, 0, s)),   # x (f32)
        pl.BlockSpec((Cout, Cin), lambda n, s: (0, 0)),          # folded weights (bf16)
    ]
    operands = [x, w_bf16]
    if bn_relu:
        in_specs.append(pl.BlockSpec((Cout, 1), lambda n, s: (0, 0)))  # BN shift (f32)
        operands.append(shift)

    # Explicit VMEM limit: generous enough for big tiles on v5e (16 MiB scoped
    # default), capped at 32 MiB which is safe on every generation incl. v7x.
    footprint = (2 * Cin * TS * 4 + 2 * Cout * TS * out_bytes
                 + 2 * Cout * max(Cin, 128) * 2 + 2 * max(Cout, 8) * 128 * 4)
    vmem_limit = int(min(max(footprint + (4 << 20), 16 << 20), 32 << 20))

    out_flat = pl.pallas_call(
        _make_reducer_kernel(bool(bn_relu)),
        out_shape=jax.ShapeDtypeStruct((N, Cout, HW_pad), out_dtype),
        grid_spec=pltpu.PrefetchScalarGridSpec(
            num_scalar_prefetch=0,
            grid=(N, n_sblocks),
            in_specs=in_specs,
            out_specs=pl.BlockSpec((None, Cout, TS), lambda n, s: (n, 0, s)),
        ),
        compiler_params=pltpu.CompilerParams(
            dimension_semantics=("parallel", "parallel"),
            vmem_limit_bytes=vmem_limit),
    )(*operands)

    if HW_pad != HW:
        out_flat = out_flat[:, :, :HW]
    # (N, Cout, H*W) -> (N, Cout, H, W): reshape only, already NCHW.
    return out_flat.reshape(N, Cout, H, W)


def _reference_forward(x_nchw, w_oihw, bn_gamma, bn_beta, bn_mean, bn_var,
                       eps=1e-5, bn_relu=True):
    """Plain-JAX f32 reference matching the PyTorch module (eval-mode BN)."""
    w = w_oihw.reshape(w_oihw.shape[0], w_oihw.shape[1])
    y = jnp.einsum("nchw,kc->nkhw", x_nchw, w)
    if bn_relu:
        scale = bn_gamma / jnp.sqrt(bn_var + eps)
        shift = bn_beta - bn_mean * scale
        y = y * scale[None, :, None, None] + shift[None, :, None, None]
        y = jnp.maximum(y, 0.0)
    return y


if __name__ == "__main__":
    key = jax.random.PRNGKey(0)
    ks = jax.random.split(key, 6)

    # Small shapes consistent with the module (a channel reducer):
    # N=2, Cin=32 -> Cout=16, spatial 16x16 (H*W = 256, lane-dense).
    N, Cin, H, W = 2, 32, 16, 16
    Cout = 16

    x = jax.random.normal(ks[0], (N, Cin, H, W), jnp.float32)
    w = 0.1 * jax.random.normal(ks[1], (Cout, Cin, 1, 1), jnp.float32)  # conv1x1, bias=False
    bn_gamma = 1.0 + 0.1 * jax.random.normal(ks[2], (Cout,), jnp.float32)
    bn_beta = 0.1 * jax.random.normal(ks[3], (Cout,), jnp.float32)
    bn_mean = 0.05 * jax.random.normal(ks[4], (Cout,), jnp.float32)
    bn_var = jnp.abs(1.0 + 0.1 * jax.random.normal(ks[5], (Cout,), jnp.float32))

    # bn_relu=True path (conv -> BN -> ReLU)
    out = reducer_forward(x, w, bn_gamma, bn_beta, bn_mean, bn_var)
    out = jax.block_until_ready(out)
    ref = _reference_forward(x, w, bn_gamma, bn_beta, bn_mean, bn_var)
    assert out.shape == (N, Cout, H, W)
    # Weights/activations are rounded to bf16 for the MXU (f32 accumulation),
    # so compare against the f32 reference with a bf16-appropriate tolerance.
    assert jnp.allclose(out, ref, atol=1e-2, rtol=1e-2), "mismatch vs reference (bn_relu=True)"

    # bn_relu=False path (conv only; shift operand and add are dropped)
    out2 = reducer_forward(x, w, bn_gamma, bn_beta, bn_mean, bn_var, bn_relu=False)
    out2 = jax.block_until_ready(out2)
    ref2 = _reference_forward(x, w, bn_gamma, bn_beta, bn_mean, bn_var, bn_relu=False)
    assert jnp.allclose(out2, ref2, atol=1e-2, rtol=1e-2), "mismatch vs reference (bn_relu=False)"

    # TODO(synk): training-mode BatchNorm (batch statistics + running-stat update) is not
    # implemented; the kernel folds running stats, i.e. eval-mode forward semantics.

    print("KERNEL_OK")
</pallas_src>

<mosaic_0001>
module attributes {stable_mosaic.version = 11 : i64} {
  func.func @kernel(%arg0: i32, %arg1: i32, %arg2: memref<1x32x256xf32, #tpu.memory_space<vmem>>, %arg3: memref<16x32xbf16, #tpu.memory_space<vmem>>, %arg4: memref<16x1xf32, #tpu.memory_space<vmem>>, %arg5: memref<1x16x256xf32, #tpu.memory_space<vmem>>) attributes {dimension_semantics = [#tpu.dimension_semantics<parallel>, #tpu.dimension_semantics<parallel>], iteration_bounds = array<i64: 2, 1>, scalar_prefetch = 0 : i64, scratch_operands = 0 : i64, tpu.core_type = #tpu.core_type<tc>, window_params = [{transform_indices = @transform_0, window_bounds = array<i64: 1, 32, 256>}, {pipeline_mode = #tpu.pipeline_mode<synchronous>, transform_indices = @transform_1, window_bounds = array<i64: 16, 32>}, {pipeline_mode = #tpu.pipeline_mode<synchronous>, transform_indices = @transform_2, window_bounds = array<i64: 16, 1>}, {transform_indices = @transform_3, window_bounds = array<i64: 1, 16, 256>}]} {
    %c0 = arith.constant 0 : index
    %c0_0 = arith.constant 0 : index
    %c0_1 = arith.constant 0 : index
    %0 = vector.load %arg2[%c0, %c0_0, %c0_1] : memref<1x32x256xf32, #tpu.memory_space<vmem>>, vector<1x32x256xf32>
    %1 = vector.shape_cast %0 : vector<1x32x256xf32> to vector<32x256xf32>
    %2 = arith.truncf %1 : vector<32x256xf32> to vector<32x256xbf16>
    %c0_2 = arith.constant 0 : index
    %c0_3 = arith.constant 0 : index
    %3 = vector.load %arg3[%c0_2, %c0_3] : memref<16x32xbf16, #tpu.memory_space<vmem>>, vector<16x32xbf16>
    %cst = arith.constant dense<0.000000e+00> : vector<16x256xf32>
    %4 = tpu.matmul %3, %2, %cst {dimension_numbers = #tpu.dot_dimension_numbers<[1], [0], [0], [1], [0, 0, 1, 1], [], []>} : vector<16x32xbf16>, vector<32x256xbf16>, vector<16x256xf32> -> vector<16x256xf32>
    %c0_4 = arith.constant 0 : index
    %c0_5 = arith.constant 0 : index
    %5 = vector.load %arg4[%c0_4, %c0_5] : memref<16x1xf32, #tpu.memory_space<vmem>>, vector<16x1xf32>
    %6 = vector.broadcast %5 : vector<16x1xf32> to vector<16x256xf32>
    %7 = arith.addf %4, %6 : vector<16x256xf32>
    %cst_6 = arith.constant 0.000000e+00 : f32
    %8 = vector.broadcast %cst_6 : f32 to vector<16x256xf32>
    %9 = arith.maximumf %7, %8 : vector<16x256xf32>
    %c0_7 = arith.constant 0 : index
    %c0_8 = arith.constant 0 : index
    %c0_9 = arith.constant 0 : index
    %10 = vector.load %arg5[%c0_7, %c0_8, %c0_9] : memref<1x16x256xf32, #tpu.memory_space<vmem>>, vector<1x16x256xf32>
    %11 = vector.shape_cast %10 : vector<1x16x256xf32> to vector<16x256xf32>
    %12 = vector.shape_cast %9 : vector<16x256xf32> to vector<1x16x256xf32>
    tpu.vector_store %arg5[%c0_7, %c0_8, %c0_9], %12 {strides = array<i32>} : memref<1x16x256xf32, #tpu.memory_space<vmem>>, vector<1x16x256xf32>,
    return
  }
  func.func @transform_0(%arg0: i32, %arg1: i32) -> (i32, i32, i32) {
    %c0_i32 = arith.constant 0 : i32
    %c0_i32_0 = arith.constant 0 : i32
    return %arg0, %c0_i32, %arg1 : i32, i32, i32
  }
  func.func @transform_1(%arg0: i32, %arg1: i32) -> (i32, i32) {
    %c0_i32 = arith.constant 0 : i32
    %c0_i32_0 = arith.constant 0 : i32
    %c0_i32_1 = arith.constant 0 : i32
    return %c0_i32, %c0_i32_0 : i32, i32
  }
  func.func @transform_2(%arg0: i32, %arg1: i32) -> (i32, i32) {
    %c0_i32 = arith.constant 0 : i32
    %c0_i32_0 = arith.constant 0 : i32
    %c0_i32_1 = arith.constant 0 : i32
    return %c0_i32, %c0_i32_0 : i32, i32
  }
  func.func @transform_3(%arg0: i32, %arg1: i32) -> (i32, i32, i32) {
    %c0_i32 = arith.constant 0 : i32
    %c0_i32_0 = arith.constant 0 : i32
    return %arg0, %c0_i32, %arg1 : i32, i32, i32
  }
}

</mosaic_0001>

<llo_original>
// kernel: reducer_forward.1
$region0: #{reducer_forward.1}
  #allocation0 [shape = 'u32[]', space=smem, size = 0x4, offset = 0x4, fixed_abs, tag = 'smem constant byte address 0x4 - core index']
  #allocation1 [shape = 'u32[72,128]{1,0:T(1,128)}', space=vmem, size = 0x9000, scoped, tag = 'internal scratch']
  %s0 = inlined_call_operand.vmem [shape: f32[2,32,256], index: 0, kind: input, shape index: {}]
  %s1 = inlined_call_operand.vmem [shape: bf16[16,32], index: 1, kind: input, shape index: {}]
  %s2 = inlined_call_operand.vmem [shape: f32[16,1], index: 2, kind: input, shape index: {}]
  %s3 = inlined_call_operand.vmem [shape: f32[2,16,256], index: 3, kind: output, shape index: {}]
  %s4 = sld [smem:[#allocation0]]
  $region45: #{reducer_forward.1} parent=0
    _
  %s6 = ssub.s32 1, %s4
  %s7 = scalar_select 0, %s6, %s4
  loop: start=0, step=1, limit=4
  $region2: #{reducer_forward.1} parent=0 // loop_pre_header
    _
  $region3: #{reducer_forward.1} parent=0 // loop_header
    %s9 = sphi 0, %s13
    %p10 = scmp.ge.s32.totalorder %s9, 4
    %s16 = sphi 0, %s28
    %s17 = sphi 0, %s24
    %s18 = sphi 0, %s16
    %s19 = sphi 0, %s17
    %s20 = sphi 0, %s18
    %s21 = sphi 0, %s19
    %s33 = sphi 0, %s35
    %s36 = sphi 0, %s33
    %s37 = sphi 0, %s36
    %s53 = sphi 0, %s37
    %s57 = sphi 0, %s57
    %s59 = sphi 0, %s57
    %s60 = sphi 0, %s59
    %s74 = sphi 0, %s60
    %s78 = sphi 0, %s78
    %s80 = sphi 0, %s78
    %s81 = sphi 0, %s80
    %s95 = sphi 0, %s81
    %s103 = sphi 0, %s105
    %s106 = sphi 0, %s103
    %s107 = sphi 0, %s106
    %s123 = sphi 0, %s107
  $region4: #{reducer_forward.1} parent=0 // loop_header_branch
    %12 = sbr.rel (%p10) target = $region8
  $region5: #{reducer_forward.1} parent=0 // loop_body
    %s14 = ssub.s32 %s9, 1
    %s15 = ssub.s32 %s9, 2
    %s22 = sadd.s32 1, %s17
    %p23 = scmp.ge.s32.totalorder %s22, 1
    %s24 = scalar_select %p23, 0, %s22
    %s25 = sadd.s32 1, %s16
    %s26 = scalar_select %p23, %s25, %s16
    %p27 = scmp.ge.s32.totalorder %s26, 2
    %s28 = scalar_select %p27, 0, %s26
    %s29 = ssub.s32 %s16, %s28
    %s30 = ssub.s32 %s17, %s24
    %s31 = sor.u32 %s29, %s30
    %p32 = scmp.eq.s32.totalorder %s31, 0
    %s34 = sadd.s32 %s33, 1
    %s35 = scalar_select %p32, %s33, %s34
    %p38 = pneg %p32
    %p39 = scmp.eq.s32.totalorder %s9, 1
    %p40 = por %p38, %p39
    %p41 = scmp.ne.s32.totalorder %s33, %s36
    %p42 = scmp.eq.s32.totalorder %s9, 0
    %p43 = por %p41, %p42
    %p44 = scmp.ne.s32.totalorder %s33, %s36
    %p45 = scmp.eq.s32.totalorder %s14, 1
    %p46 = por %p44, %p45
    %p47 = scmp.ne.s32.totalorder %s36, %s37
    %p48 = scmp.eq.s32.totalorder %s14, 0
    %p49 = por %p47, %p48
    %p50 = scmp.ne.s32.totalorder %s36, %s37
    %p51 = scmp.eq.s32.totalorder %s15, 1
    %p52 = por %p50, %p51
    %p54 = scmp.ne.s32.totalorder %s37, %s53
    %p55 = scmp.eq.s32.totalorder %s15, 0
    %p56 = por %p54, %p55
    %s58 = sadd.s32 %s57, 1
    %p61 = scmp.eq.s32.totalorder %s9, 1
    %p62 = scmp.ne.s32.totalorder %s57, %s59
    %p63 = scmp.eq.s32.totalorder %s9, 0
    %p64 = por %p62, %p63
    %p65 = scmp.ne.s32.totalorder %s57, %s59
    %p66 = scmp.eq.s32.totalorder %s14, 1
    %p67 = por %p65, %p66
    %p68 = scmp.ne.s32.totalorder %s59, %s60
    %p69 = scmp.eq.s32.totalorder %s14, 0
    %p70 = por %p68, %p69
    %p71 = scmp.ne.s32.totalorder %s59, %s60
    %p72 = scmp.eq.s32.totalorder %s15, 1
    %p73 = por %p71, %p72
    %p75 = scmp.ne.s32.totalorder %s60, %s74
    %p76 = scmp.eq.s32.totalorder %s15, 0
    %p77 = por %p75, %p76
    %s79 = sadd.s32 %s78, 1
    %p82 = scmp.eq.s32.totalorder %s9, 1
    %p83 = scmp.ne.s32.totalorder %s78, %s80
    %p84 = scmp.eq.s32.totalorder %s9, 0
    %p85 = por %p83, %p84
    %p86 = scmp.ne.s32.totalorder %s78, %s80
    %p87 = scmp.eq.s32.totalorder %s14, 1
    %p88 = por %p86, %p87
    %p89 = scmp.ne.s32.totalorder %s80, %s81
    %p90 = scmp.eq.s32.totalorder %s14, 0
    %p91 = por %p89, %p90
    %p92 = scmp.ne.s32.totalorder %s80, %s81
    %p93 = scmp.eq.s32.totalorder %s15, 1
    %p94 = por %p92, %p93
    %p96 = scmp.ne.s32.totalorder %s81, %s95
    %p97 = scmp.eq.s32.totalorder %s15, 0
    %p98 = por %p96, %p97
    %s99 = ssub.s32 %s16, %s28
    %s100 = ssub.s32 %s17, %s24
    %s101 = sor.u32 %s99, %s100
    %p102 = scmp.eq.s32.totalorder %s101, 0
    %s104 = sadd.s32 %s103, 1
    %s105 = scalar_select %p102, %s103, %s104
    %p108 = pneg %p102
    %p109 = scmp.eq.s32.totalorder %s9, 1
    %p110 = por %p108, %p109
    %p111 = scmp.ne.s32.totalorder %s103, %s106
    %p112 = scmp.eq.s32.totalorder %s9, 0
    %p113 = por %p111, %p112
    %p114 = scmp.ne.s32.totalorder %s103, %s106
    %p115 = scmp.eq.s32.totalorder %s14, 1
    %p116 = por %p114, %p115
    %p117 = scmp.ne.s32.totalorder %s106, %s107
    %p118 = scmp.eq.s32.totalorder %s14, 0
    %p119 = por %p117, %p118
    %p120 = scmp.ne.s32.totalorder %s106, %s107
    %p121 = scmp.eq.s32.totalorder %s15, 1
    %p122 = por %p120, %p121
    %p124 = scmp.ne.s32.totalorder %s107, %s123
    %p125 = scmp.eq.s32.totalorder %s15, 0
    %p126 = por %p124, %p125
    %p127 = scmp.le.s32.totalorder 1, %s9
    %p128 = scmp.lt.s32.totalorder %s9, 3
    %p129 = pnand %p127, %p128
    %p130 = pneg %p129
    // Predicated region
    $region9: #{reducer_forward.1} parent=5 // pred_check
      _
    $region10: #{reducer_forward.1} parent=5 // pred_check_branch
      %132 = sbr.rel (%p129) target = $region12
    $region11: #{reducer_forward.1} parent=5 // pred_region
      %s133 = ssub.s32 %s9, 1
      // Predicated region
      $region13: #{reducer_forward.1} parent=11 // pred_check
        %p134 = pneg %p70
      $region14: #{reducer_forward.1} parent=11 // pred_check_branch
        %136 = sbr.rel (%p134) target = $region16
      $region15: #{reducer_forward.1} parent=11 // pred_region
        _
      $region16: #{reducer_forward.1} parent=11 // pred_fallthru
        _
      // Predicated region
      $region17: #{reducer_forward.1} parent=11 // pred_check
        %p137 = pneg %p91
      $region18: #{reducer_forward.1} parent=11 // pred_check_branch
        %139 = sbr.rel (%p137) target = $region20
      $region19: #{reducer_forward.1} parent=11 // pred_region
        _
      $region20: #{reducer_forward.1} parent=11 // pred_fallthru
        _
    $region12: #{reducer_forward.1} parent=5 // pred_fallthru
      _
    %p140 = scmp.lt.s32.totalorder %s9, 2
    // Predicated region
    $region21: #{reducer_forward.1} parent=5 // pred_check
      %p141 = pneg %p140
    $region22: #{reducer_forward.1} parent=5 // pred_check_branch
      %143 = sbr.rel (%p141) target = $region24
    $region23: #{reducer_forward.1} parent=5 // pred_region
      // Predicated region
      $region25: #{reducer_forward.1} parent=23 // pred_check
        %p144 = pneg %p43
      $region26: #{reducer_forward.1} parent=23 // pred_check_branch
        %146 = sbr.rel (%p144) target = $region28
      $region27: #{reducer_forward.1} parent=23 // pred_region
        %s147 = smul.u32 2, %s17
        %p148 = scmp.lt.s32.totalorder %s16, 1
        %s149 = scalar_select %p148, %s16, 1
        %p150 = scmp.lt.s32.totalorder %s147, 1
        %s151 = scalar_select %p150, %s147, 1
        %s152 = smul.addr %s149, 8
        %s153 = sadd.s32 %s151, %s152
        %s154 = smul.addr %s153, 8
        %s155 = scalar_lea.vmem %s0, %s154
        %s156 = smul.u32 2, %s17
      $region28: #{reducer_forward.1} parent=23 // pred_fallthru
        _
    $region24: #{reducer_forward.1} parent=5 // pred_fallthru
      _
    %p157 = scmp.le.s32.totalorder 1, %s9
    %p158 = scmp.lt.s32.totalorder %s9, 3
    %p159 = pnand %p157, %p158
    %p160 = pneg %p159
    // Predicated region
    $region29: #{reducer_forward.1} parent=5 // pred_check
      _
    $region30: #{reducer_forward.1} parent=5 // pred_check_branch
      %162 = sbr.rel (%p159) target = $region32
    $region31: #{reducer_forward.1} parent=5 // pred_region
      %s163 = ssub.s32 %s9, 1
      %s164 = smul.u32 2, %s19
      %p165 = scmp.lt.s32.totalorder %s18, 1
      %s166 = scalar_select %p165, %s18, 1
      %p167 = scmp.lt.s32.totalorder %s164, 1
      %s168 = scalar_select %p167, %s164, 1
      %s169 = smul.addr %s166, 8
      %s170 = sadd.s32 %s168, %s169
      %s171 = smul.addr %s170, 8
      %s172 = scalar_lea.vmem %s0, %s171
      %p173 = pneg %p49
      %p174 = pneg %p46
      %p175 = pneg %p70
      %p176 = pneg %p67
      %p177 = pneg %p91
      %p178 = pneg %p88
      %p179 = pneg %p119
      %p180 = pneg %p116
      %s181 = smul.u32 2, %s19
      %p182 = scmp.lt.s32.totalorder %s18, 1
      %s183 = scalar_select %p182, %s18, 1
      %p184 = scmp.lt.s32.totalorder %s181, 1
      %s185 = scalar_select %p184, %s181, 1
      %s186 = smul.addr %s183, 4
      %s187 = sadd.s32 %s185, %s186
      %s188 = smul.addr %s187, 8
      %s189 = scalar_lea.vmem %s3, %s188
      %s190 = smul.u32 2, %s19
      %p191 = scmp.lt.s32.totalorder %s18, 1
      %s192 = scalar_select %p191, %s18, 1
      %p193 = scmp.lt.s32.totalorder %s190, 1
      %s194 = scalar_select %p193, %s190, 1
      %s195 = smul.addr %s192, 8
      %s196 = sadd.s32 %s194, %s195
      %s197 = smul.addr %s196, 8
      %s198 = scalar_lea.vmem %s0, %s197
      %s199 = smul.u32 2, %s19
      %s200 = smul.u32 2, %s19
      %p201 = scmp.lt.s32.totalorder %s18, 1
      %s202 = scalar_select %p201, %s18, 1
      %p203 = scmp.lt.s32.totalorder %s200, 1
      %s204 = scalar_select %p203, %s200, 1
      %s205 = smul.addr %s202, 4
      %s206 = sadd.s32 %s204, %s205
      %s207 = smul.addr %s206, 8
      %s208 = scalar_lea.vmem %s3, %s207
      %s209 = smul.u32 2, %s19
      %v211 = vld [vmem:[%s198] sm:$0xff]
      %v212 = vld [vmem:[%s198 + $0x8] sm:$0xff]
      %v213 = vld [vmem:[%s198 + $0x10] sm:$0xff]
      %v214 = vld [vmem:[%s198 + $0x18] sm:$0xff]
      %v215 = vld [vmem:[%s198 + $0x20] sm:$0xff]
      %v216 = vld [vmem:[%s198 + $0x28] sm:$0xff]
      %v217 = vld [vmem:[%s198 + $0x30] sm:$0xff]
      %v218 = vld [vmem:[%s198 + $0x38] sm:$0xff]
      %v219 = vpack.c.bf16 %v213, %v211
      %v220 = vpack.c.bf16 %v214, %v212
      %v221 = vpack.c.bf16 %v217, %v215
      %v222 = vpack.c.bf16 %v218, %v216
      %v223 = vld [vmem:[%s1] sm:$0xf]
      %v224 = vld [vmem:[%s1 + $0x4] sm:$0xf]
      %v225 = vld [vmem:[%s2] sm:$0xff]
      %v226 = vld [vmem:[%s2 + $0x8] sm:$0xff]
      %228 = vset.pattern.permute.xlu0 0
      %229 = vperm.xlu0 %228, %v225
      %v230 = vpop.permute.xlu0 %229
      %233 = vset.pattern.permute.xlu0 0
      %234 = vperm.xlu0 %233, %v226
      %v235 = vpop.permute.xlu0 %234
      %v239 = vunpack.c.l.b16 %v223
      %v240 = vunpack.c.l.b16 %v224
      %v241 = vpack.c.b16 %v240, %v239
      %vm242 = vcmask 261120
      %v244 = vsel %vm242, %v241, 0
      %246 = vmatpush.bf16.msra.mxu0 0
      %247 = vmatpush.bf16.msra.mxu0 0
      %248 = vmatpush.bf16.msra.mxu0 0
      %249 = vmatpush.bf16.msra.mxu0 0
      %250 = vmatpush.bf16.msra.mxu0 0
      %251 = vmatpush.bf16.msra.mxu0 0
      %252 = vmatpush.bf16.msra.mxu0 %v221
      %253 = vmatpush.bf16.msra.mxu0 %v219
      %254 = vmatmul.bf16.gmra.mxu0 %v244
      %v255 = vpop.f32.mrf.mxu0
      %v256 = vadd.f32 %v230, %v255
      %v257 = vpop.f32.mrf.mxu0
      %v258 = vadd.f32 %v235, %v257
      %259 = vdwg.mxu0
      %260 = vmatpush.bf16.msra.mxu0 0
      %261 = vmatpush.bf16.msra.mxu0 0
      %262 = vmatpush.bf16.msra.mxu0 0
      %263 = vmatpush.bf16.msra.mxu0 0
      %264 = vmatpush.bf16.msra.mxu0 0
      %265 = vmatpush.bf16.msra.mxu0 0
      %266 = vmatpush.bf16.msra.mxu0 %v222
      %267 = vmatpush.bf16.msra.mxu0 %v220
      %268 = vmatmul.bf16.gmra.mxu0 %v244
      %v269 = vpop.f32.mrf.mxu0
      %v270 = vadd.f32 %v230, %v269
      %v271 = vpop.f32.mrf.mxu0
      %v272 = vadd.f32 %v235, %v271
      %273 = vdwg.mxu0
      %v274 = vmax.f32 %v256, 0.0
      %v275 = vmax.f32 %v270, 0.0
      %v276 = vmax.f32 %v258, 0.0
      %v277 = vmax.f32 %v272, 0.0
      %278 = vst [vmem:[%s208] sm:$0xff] %v274
      %279 = vst [vmem:[%s208 + $0x8] sm:$0xff] %v275
      %280 = vst [vmem:[%s208 + $0x10] sm:$0xff] %v276
      %281 = vst [vmem:[%s208 + $0x18] sm:$0xff] %v277
      %s282 = smul.u32 2, %s19
      %p283 = scmp.lt.s32.totalorder %s18, 1
      %s284 = scalar_select %p283, %s18, 1
      %p285 = scmp.lt.s32.totalorder %s282, 1
      %s286 = scalar_select %p285, %s282, 1
      %s287 = smul.addr %s284, 4
      %s288 = sadd.s32 %s286, %s287
      %s289 = smul.addr %s288, 8
      %s290 = scalar_lea.vmem %s3, %s289
      // Predicated region
      $region33: #{reducer_forward.1} parent=31 // pred_check
        %p291 = pneg %p116
      $region34: #{reducer_forward.1} parent=31 // pred_check_branch
        %293 = sbr.rel (%p291) target = $region36
      $region35: #{reducer_forward.1} parent=31 // pred_region
        %s294 = smul.u32 2, %s19
      $region36: #{reducer_forward.1} parent=31 // pred_fallthru
        _
    $region32: #{reducer_forward.1} parent=5 // pred_fallthru
      _
    %p295 = scmp.le.s32.totalorder 2, %s9
    // Predicated region
    $region37: #{reducer_forward.1} parent=5 // pred_check
      %p296 = pneg %p295
    $region38: #{reducer_forward.1} parent=5 // pred_check_branch
      %298 = sbr.rel (%p296) target = $region40
    $region39: #{reducer_forward.1} parent=5 // pred_region
      %s299 = ssub.s32 %s9, 2
      // Predicated region
      $region41: #{reducer_forward.1} parent=39 // pred_check
        %p300 = pneg %p122
      $region42: #{reducer_forward.1} parent=39 // pred_check_branch
        %302 = sbr.rel (%p300) target = $region44
      $region43: #{reducer_forward.1} parent=39 // pred_region
        %s303 = smul.u32 2, %s21
        %p304 = scmp.lt.s32.totalorder %s20, 1
        %s305 = scalar_select %p304, %s20, 1
        %p306 = scmp.lt.s32.totalorder %s303, 1
        %s307 = scalar_select %p306, %s303, 1
        %s308 = smul.addr %s305, 4
        %s309 = sadd.s32 %s307, %s308
        %s310 = smul.addr %s309, 8
        %s311 = scalar_lea.vmem %s3, %s310
      $region44: #{reducer_forward.1} parent=39 // pred_fallthru
        _
    $region40: #{reducer_forward.1} parent=5 // pred_fallthru
      _
  $region6: #{reducer_forward.1} parent=0 // loop_footer
    %s13 = sadd.s32 1, %s9
  $region7: #{reducer_forward.1} parent=0 // loop_footer_branch
    %8 = sbr.rel target = $region3
  $region8: #{reducer_forward.1} parent=0 // loop_exit
    _

</llo_original>
